<compile_context>
chip_gen: v5e
topology: v5e:2x2
jax: 0.10.0
libtpu: 0.0.40
codegen_flags: <defaults>
</compile_context>

<pallas_src>
import functools

import jax
import jax.numpy as jnp
from jax.experimental import pallas as pl
from jax.experimental.pallas import tpu as pltpu

_MIB = 1024 * 1024


# ----------------------------------------------------------------------------- kernels
def _convt_bn_silu_kernel(x_ref, w_ref, shift_ref, o_ref):
    """One (batch, spatial-tile) block of SiLU((w @ x) + shift)."""
    x = x_ref[...]
    if x.dtype != w_ref.dtype:          # skip the cast when x is already bf16
        x = x.astype(w_ref.dtype)
    acc = jnp.dot(w_ref[...], x, preferred_element_type=jnp.float32)
    y = acc + shift_ref[...]            # folded BN shift (f32)
    o_ref[...] = (y * jax.nn.sigmoid(y)).astype(o_ref.dtype)   # SiLU


def _convt_bn_silu_ktiled_kernel(x_ref, w_ref, shift_ref, o_ref, acc_ref):
    """Same computation with the C1 contraction tiled over the last grid axis."""
    @pl.when(pl.program_id(2) == 0)
    def _():
        acc_ref[...] = jnp.zeros_like(acc_ref)

    x = x_ref[...]
    if x.dtype != w_ref.dtype:
        x = x.astype(w_ref.dtype)
    acc_ref[...] += jnp.dot(w_ref[...], x, preferred_element_type=jnp.float32)

    @pl.when(pl.program_id(2) == pl.num_programs(2) - 1)
    def _():
        y = acc_ref[...] + shift_ref[...]
        o_ref[...] = (y * jax.nn.sigmoid(y)).astype(o_ref.dtype)


# ----------------------------------------------------------------------------- planning
def _round_up(v, m):
    return -(-v // m) * m


def _vmem_budget():
    """(tile-picker budget bytes, compiler vmem_limit bytes), generation-aware."""
    try:
        cap = int(pltpu.get_tpu_info().vmem_capacity_bytes)
    except Exception:
        cap = 64 * _MIB                       # assume the tightest (v7x-sized) VMEM
    if cap > 96 * _MIB:                       # v5e / v6e: 128 MiB physical VMEM
        return 64 * _MIB, 96 * _MIB
    return 28 * _MIB, 48 * _MIB               # v7x: 64 MiB physical VMEM


def _pick_spatial_tile(hw, n_batch, c1_blk, ckk, x_bytes, w_bytes, out_bytes,
                       budget_bytes, max_tile=4096):
    """Largest lane-aligned spatial tile whose VMEM working set fits the budget."""
    if hw <= 128:
        return int(hw)
    sub_x = 16 if x_bytes < 4 else 8
    sub_o = 16 if out_bytes < 4 else 8
    # per-spatial-column cost: double-buffered x / out blocks + f32 acc/epilogue temp
    per_col = (2 * _round_up(c1_blk, sub_x) * x_bytes
               + 2 * _round_up(ckk, sub_o) * out_bytes
               + _round_up(ckk, 8) * 4)
    # grid-invariant blocks (conservatively counted double-buffered), lane-padded.
    # TODO(synk): single-buffer weight/shift (pipeline_mode=pl.Buffered(1)) once
    # verified on hardware, then drop the 2x here.
    resident = (2 * _round_up(ckk, 16) * _round_up(c1_blk, 128) * w_bytes
                + 2 * _round_up(ckk, 8) * 128 * 4)
    avail = max(budget_bytes - resident, 128 * per_col)
    ts = min(hw, avail // per_col, max_tile)
    ts = max(128, (ts // 128) * 128)
    # keep >= 4 total grid steps so both v7x TensorCores get >= 2 steps each
    n_tiles_needed = -(-4 // n_batch)
    if n_tiles_needed > 1:
        ts = min(ts, max(128, (hw // n_tiles_needed) // 128 * 128))
    # prefer a tile that divides HW -> no masked partial last tile
    if hw % 128 == 0 and hw % ts != 0:
        for cand in range(ts, 127, -128):
            if hw % cand == 0:
                ts = cand
                break
    return int(ts)


def _plan_tiling(hw, n_batch, c1, ckk, x_bytes, w_bytes, out_bytes, c1_tile):
    """Return (spatial_tile, c1_block, vmem_limit_bytes)."""
    budget, vmem_limit = _vmem_budget()
    if c1_tile is not None:
        ts = _pick_spatial_tile(hw, n_batch, c1_tile, ckk, x_bytes, w_bytes,
                                out_bytes, budget)
        return ts, int(c1_tile), vmem_limit
    # try the full contraction first, then K-tile with 128-lane multiples of C1
    candidates = [c1] + [c for c in (1024, 512, 256, 128)
                         if c < c1 and c1 % c == 0]
    ts, ct = 128, c1
    for ct in candidates:
        ts = _pick_spatial_tile(hw, n_batch, ct, ckk, x_bytes, w_bytes,
                                out_bytes, budget)
        if ts >= min(512, hw):
            return ts, ct, vmem_limit
    return ts, ct, vmem_limit


# ----------------------------------------------------------------------------- wrapper
@functools.partial(
    jax.jit,
    static_argnames=("k", "s", "p", "eps", "compute_dtype", "out_dtype", "c1_tile"))
def conv_transpose_bn_silu(x, weight, bn_gamma, bn_beta, bn_mean, bn_var, *,
                           k=2, s=2, p=0, eps=1e-5,
                           compute_dtype=jnp.bfloat16,
                           out_dtype=jnp.bfloat16,
                           c1_tile=None):
    """x: [N, C1, H, W] (NCHW); weight: [C1, C2, k, k] (torch ConvTranspose2d layout).

    out_dtype defaults to bf16 (halves the pixel-shuffle write traffic); pass
    out_dtype=x.dtype to reproduce the exact PyTorch output dtype.
    """
    if k != s or p != 0:
        # TODO(synk): general (k != s or p != 0) ConvTranspose2d needs overlapping
        # output accumulation; not covered by this non-overlapping matmul kernel.
        raise NotImplementedError("kernel covers the non-overlapping k == s, p == 0 case")
    N, C1, H, W = x.shape
    wc1, C2, kh, kw = weight.shape
    assert wc1 == C1 and kh == k and kw == k, "weight/kernel-size mismatch"
    Ckk = C2 * k * k
    HW = H * W

    # ---- fold BN (inference) into the weight / a per-row shift (fold in f32) ----
    bn_scale = (bn_gamma / jnp.sqrt(bn_var + eps)).astype(jnp.float32)
    bn_shift = (bn_beta - bn_mean * bn_scale).astype(jnp.float32)
    # rows ordered (cout, di, dj)
    w_t = jnp.transpose(weight.astype(jnp.float32), (1, 2, 3, 0)).reshape(Ckk, C1)
    w_t = (w_t * jnp.repeat(bn_scale, k * k)[:, None]).astype(compute_dtype)
    shift = jnp.repeat(bn_shift, k * k).reshape(Ckk, 1)

    # ---- tiling plan -------------------------------------------------------------
    w_bytes = jnp.dtype(compute_dtype).itemsize
    out_bytes = jnp.dtype(compute_dtype).itemsize
    ts, c1_blk, vmem_limit = _plan_tiling(HW, N, C1, Ckk, x.dtype.itemsize,
                                          w_bytes, out_bytes, c1_tile)
    if c1_blk != C1 and C1 % c1_blk != 0:
        c1_blk = C1        # partial contraction blocks would read garbage -> disable
    n_sp = pl.cdiv(HW, ts)
    n_k = C1 // c1_blk

    x_r = x.reshape(N, C1, HW)       # free reshape: NCHW is already contiguous

    cost = pl.CostEstimate(
        flops=2 * N * Ckk * C1 * HW,
        transcendentals=N * Ckk * HW,
        bytes_accessed=(x.size * x.dtype.itemsize + Ckk * C1 * w_bytes
                        + Ckk * 4 + N * Ckk * HW * out_bytes))

    if n_k == 1:
        out_flat = pl.pallas_call(
            _convt_bn_silu_kernel,
            out_shape=jax.ShapeDtypeStruct((N, Ckk, HW), compute_dtype),
            grid=(N, n_sp),
            in_specs=[
                pl.BlockSpec((None, C1, ts), lambda n, si: (n, 0, si)),   # x[n] tile
                pl.BlockSpec((Ckk, C1), lambda n, si: (0, 0)),            # weight
                pl.BlockSpec((Ckk, 1), lambda n, si: (0, 0)),             # BN shift
            ],
            out_specs=pl.BlockSpec((None, Ckk, ts), lambda n, si: (n, 0, si)),
            compiler_params=pltpu.CompilerParams(
                dimension_semantics=("parallel", "parallel"),
                vmem_limit_bytes=vmem_limit),
            cost_estimate=cost,
        )(x_r, w_t, shift)
    else:
        # K-tiled fallback: contraction split over the last ("arbitrary") grid axis.
        out_flat = pl.pallas_call(
            _convt_bn_silu_ktiled_kernel,
            out_shape=jax.ShapeDtypeStruct((N, Ckk, HW), compute_dtype),
            grid=(N, n_sp, n_k),
            in_specs=[
                pl.BlockSpec((None, c1_blk, ts), lambda n, si, ki: (n, ki, si)),
                pl.BlockSpec((Ckk, c1_blk), lambda n, si, ki: (0, ki)),
                pl.BlockSpec((Ckk, 1), lambda n, si, ki: (0, 0)),
            ],
            out_specs=pl.BlockSpec((None, Ckk, ts), lambda n, si, ki: (n, 0, si)),
            scratch_shapes=[pltpu.VMEM((Ckk, ts), jnp.float32)],
            compiler_params=pltpu.CompilerParams(
                dimension_semantics=("parallel", "parallel", "arbitrary"),
                vmem_limit_bytes=vmem_limit),
            cost_estimate=cost,
        )(x_r, w_t, shift)

    # ---- pixel-shuffle back to NCHW (one bf16 XLA pass over the output) ----------
    # TODO(synk): fold this pass into the kernel (lane-interleave (j, dj) via the
    # 2xbf16->u32 pack, di as a real output axis); needs hardware validation of
    # the pack/bitcast element order before it can land safely.
    out = out_flat.reshape(N, C2, k, k, H, W)            # (n, cout, di, dj, i, j)
    out = jnp.transpose(out, (0, 1, 4, 2, 5, 3))         # (n, cout, i, di, j, dj)
    out = out.reshape(N, C2, H * k, W * k)
    return out.astype(out_dtype)


# ----------------------------------------------------------------------------- reference
def _reference(x, weight, bn_gamma, bn_beta, bn_mean, bn_var, *, k=2, eps=1e-5):
    """Pure-JAX f32 reference of ConvTranspose2d(k=s, p=0) + BN(eval) + SiLU."""
    N, C1, H, W = x.shape
    _, C2, _, _ = weight.shape
    # y[n, o, k*i+di, k*j+dj] = sum_c x[n, c, i, j] * W[c, o, di, dj]
    y = jnp.einsum("ncij,codk->noidjk", x, weight)       # (N, C2, H, k, W, k)
    y = y.reshape(N, C2, H * k, W * k)
    scale = bn_gamma / jnp.sqrt(bn_var + eps)
    shift = bn_beta - bn_mean * scale
    y = y * scale[None, :, None, None] + shift[None, :, None, None]
    return y * jax.nn.sigmoid(y)


if __name__ == "__main__":
    key = jax.random.PRNGKey(0)
    keys = jax.random.split(key, 12)
    K = S = 2

    # ---- test 1: default module config, single-matmul path ----------------------
    N, C1, C2, H, W = 2, 4, 8, 16, 16
    x = jax.random.normal(keys[0], (N, C1, H, W), dtype=jnp.float32)
    weight = 0.1 * jax.random.normal(keys[1], (C1, C2, K, K), dtype=jnp.float32)
    bn_gamma = 1.0 + 0.1 * jax.random.normal(keys[2], (C2,), dtype=jnp.float32)
    bn_beta = 0.1 * jax.random.normal(keys[3], (C2,), dtype=jnp.float32)
    bn_mean = 0.1 * jax.random.normal(keys[4], (C2,), dtype=jnp.float32)
    bn_var = jnp.abs(jax.random.normal(keys[5], (C2,), dtype=jnp.float32)) + 0.5

    out = conv_transpose_bn_silu(x, weight, bn_gamma, bn_beta, bn_mean, bn_var,
                                 k=K, s=S)
    out = jax.block_until_ready(out)
    ref = _reference(x, weight, bn_gamma, bn_beta, bn_mean, bn_var, k=K)
    assert out.shape == (N, C2, H * K, W * K), out.shape
    err = float(jnp.max(jnp.abs(out.astype(jnp.float32) - ref)))
    assert jnp.allclose(out.astype(jnp.float32), ref, atol=2e-2, rtol=2e-2), \
        f"test1 mismatch vs reference (max abs err {err:.3e})"

    # ---- test 2: large C1 exercises the K-tiled (contraction-split) path --------
    N2, C12, C22, H2, W2 = 1, 256, 8, 8, 8
    x2 = jax.random.normal(keys[6], (N2, C12, H2, W2), dtype=jnp.float32)
    w2 = 0.05 * jax.random.normal(keys[7], (C12, C22, K, K), dtype=jnp.float32)
    g2 = 1.0 + 0.1 * jax.random.normal(keys[8], (C22,), dtype=jnp.float32)
    b2 = 0.1 * jax.random.normal(keys[9], (C22,), dtype=jnp.float32)
    m2 = 0.1 * jax.random.normal(keys[10], (C22,), dtype=jnp.float32)
    v2 = jnp.abs(jax.random.normal(keys[11], (C22,), dtype=jnp.float32)) + 0.5

    out2 = conv_transpose_bn_silu(x2, w2, g2, b2, m2, v2, k=K, s=S, c1_tile=128)
    out2 = jax.block_until_ready(out2)
    ref2 = _reference(x2, w2, g2, b2, m2, v2, k=K)
    assert out2.shape == (N2, C22, H2 * K, W2 * K), out2.shape
    err2 = float(jnp.max(jnp.abs(out2.astype(jnp.float32) - ref2)))
    assert jnp.allclose(out2.astype(jnp.float32), ref2, atol=5e-2, rtol=5e-2), \
        f"test2 mismatch vs reference (max abs err {err2:.3e})"

    print("KERNEL_OK")
</pallas_src>

<mosaic_0001>
module attributes {stable_mosaic.version = 11 : i64} {
  func.func @_convt_bn_silu_kernel(%arg0: i32, %arg1: i32, %arg2: memref<1x4x128xf32, #tpu.memory_space<vmem>>, %arg3: memref<32x4xbf16, #tpu.memory_space<vmem>>, %arg4: memref<32x1xf32, #tpu.memory_space<vmem>>, %arg5: memref<1x32x128xbf16, #tpu.memory_space<vmem>>) attributes {dimension_semantics = [#tpu.dimension_semantics<parallel>, #tpu.dimension_semantics<parallel>], iteration_bounds = array<i64: 2, 2>, scalar_prefetch = 0 : i64, scratch_operands = 0 : i64, tpu.core_type = #tpu.core_type<tc>, window_params = [{transform_indices = @transform_0, window_bounds = array<i64: 1, 4, 128>}, {pipeline_mode = #tpu.pipeline_mode<synchronous>, transform_indices = @transform_1, window_bounds = array<i64: 32, 4>}, {pipeline_mode = #tpu.pipeline_mode<synchronous>, transform_indices = @transform_2, window_bounds = array<i64: 32, 1>}, {transform_indices = @transform_3, window_bounds = array<i64: 1, 32, 128>}]} {
    %c0 = arith.constant 0 : index
    %c0_0 = arith.constant 0 : index
    %c0_1 = arith.constant 0 : index
    %0 = vector.load %arg2[%c0, %c0_0, %c0_1] : memref<1x4x128xf32, #tpu.memory_space<vmem>>, vector<1x4x128xf32>
    %1 = vector.shape_cast %0 : vector<1x4x128xf32> to vector<4x128xf32>
    %2 = arith.truncf %1 : vector<4x128xf32> to vector<4x128xbf16>
    %c0_2 = arith.constant 0 : index
    %c0_3 = arith.constant 0 : index
    %3 = vector.load %arg3[%c0_2, %c0_3] : memref<32x4xbf16, #tpu.memory_space<vmem>>, vector<32x4xbf16>
    %cst = arith.constant dense<0.000000e+00> : vector<32x128xf32>
    %4 = tpu.matmul %3, %2, %cst {dimension_numbers = #tpu.dot_dimension_numbers<[1], [0], [0], [1], [0, 0, 1, 1], [], []>} : vector<32x4xbf16>, vector<4x128xbf16>, vector<32x128xf32> -> vector<32x128xf32>
    %c0_4 = arith.constant 0 : index
    %c0_5 = arith.constant 0 : index
    %5 = vector.load %arg4[%c0_4, %c0_5] : memref<32x1xf32, #tpu.memory_space<vmem>>, vector<32x1xf32>
    %6 = vector.broadcast %5 : vector<32x1xf32> to vector<32x128xf32>
    %7 = arith.addf %4, %6 : vector<32x128xf32>
    %8 = arith.negf %7 : vector<32x128xf32>
    %9 = math.exp %8 : vector<32x128xf32>
    %cst_6 = arith.constant 1.000000e+00 : f32
    %10 = vector.broadcast %cst_6 : f32 to vector<32x128xf32>
    %11 = arith.addf %10, %9 : vector<32x128xf32>
    %12 = arith.divf %10, %11 : vector<32x128xf32>
    %13 = arith.mulf %7, %12 : vector<32x128xf32>
    %14 = arith.truncf %13 : vector<32x128xf32> to vector<32x128xbf16>
    %c0_7 = arith.constant 0 : index
    %c0_8 = arith.constant 0 : index
    %c0_9 = arith.constant 0 : index
    %15 = vector.load %arg5[%c0_7, %c0_8, %c0_9] : memref<1x32x128xbf16, #tpu.memory_space<vmem>>, vector<1x32x128xbf16>
    %16 = vector.shape_cast %15 : vector<1x32x128xbf16> to vector<32x128xbf16>
    %17 = vector.shape_cast %14 : vector<32x128xbf16> to vector<1x32x128xbf16>
    tpu.vector_store %arg5[%c0_7, %c0_8, %c0_9], %17 {strides = array<i32>} : memref<1x32x128xbf16, #tpu.memory_space<vmem>>, vector<1x32x128xbf16>,
    return
  }
  func.func @transform_0(%arg0: i32, %arg1: i32) -> (i32, i32, i32) {
    %c0_i32 = arith.constant 0 : i32
    %c0_i32_0 = arith.constant 0 : i32
    return %arg0, %c0_i32, %arg1 : i32, i32, i32
  }
  func.func @transform_1(%arg0: i32, %arg1: i32) -> (i32, i32) {
    %c0_i32 = arith.constant 0 : i32
    %c0_i32_0 = arith.constant 0 : i32
    %c0_i32_1 = arith.constant 0 : i32
    return %c0_i32, %c0_i32_0 : i32, i32
  }
  func.func @transform_2(%arg0: i32, %arg1: i32) -> (i32, i32) {
    %c0_i32 = arith.constant 0 : i32
    %c0_i32_0 = arith.constant 0 : i32
    %c0_i32_1 = arith.constant 0 : i32
    return %c0_i32, %c0_i32_0 : i32, i32
  }
  func.func @transform_3(%arg0: i32, %arg1: i32) -> (i32, i32, i32) {
    %c0_i32 = arith.constant 0 : i32
    %c0_i32_0 = arith.constant 0 : i32
    return %arg0, %c0_i32, %arg1 : i32, i32, i32
  }
}

</mosaic_0001>

<llo_original>
// kernel: mul.7
$region0: #{mul.7}
  %s0 = inlined_call_operand.vmem [shape: f32[8,4], index: 0, kind: input, shape index: {}]
  %s1 = inlined_call_operand.vmem [shape: f32[32], index: 1, kind: output, shape index: {}]
  $region1: #{mul.7} parent=0
    #allocation0 [shape = 'u8[4096]{0}', space=vmem, size = 0x1000, scoped, tag = 'scoped mem for output reshape']
    %v2 = vld [vmem:[%s0] sm:$0x1]
    %vm3 = vcmask 31744
    %4 = vst.msk [vmem:[#allocation0] sm:$0x1] %vm3, %v2
    %s5 = scalar_lea.vmem %s0, 7
    %v6 = vld [vmem:[%s5] sm:$0x1]
    %7 = vrot.lane.b32.xlu0 %v6, 28
    %v8 = vpop.permute.xlu0 %7
    %vm9 = vcmask 261344
    %10 = vst.msk [vmem:[#allocation0] sm:$0x1] %vm9, %v8
    %s11 = scalar_lea.vmem %s0, 6
    %v12 = vld [vmem:[%s11] sm:$0x1]
    %13 = vrot.lane.b32.xlu0 %v12, 24
    %v14 = vpop.permute.xlu0 %13
    %vm15 = vcmask 228544
    %16 = vst.msk [vmem:[#allocation0] sm:$0x1] %vm15, %v14
    %s17 = scalar_lea.vmem %s0, 5
    %v18 = vld [vmem:[%s17] sm:$0x1]
    %19 = vrot.lane.b32.xlu0 %v18, 20
    %v20 = vpop.permute.xlu0 %19
    %vm21 = vcmask 195744
    %22 = vst.msk [vmem:[#allocation0] sm:$0x1] %vm21, %v20
    %s23 = scalar_lea.vmem %s0, 4
    %v24 = vld [vmem:[%s23] sm:$0x1]
    %25 = vrot.lane.b32.xlu0 %v24, 16
    %v26 = vpop.permute.xlu0 %25
    %vm27 = vcmask 162944
    %28 = vst.msk [vmem:[#allocation0] sm:$0x1] %vm27, %v26
    %s29 = scalar_lea.vmem %s0, 3
    %v30 = vld [vmem:[%s29] sm:$0x1]
    %31 = vrot.lane.b32.xlu0 %v30, 12
    %v32 = vpop.permute.xlu0 %31
    %vm33 = vcmask 130144
    %34 = vst.msk [vmem:[#allocation0] sm:$0x1] %vm33, %v32
    %s35 = scalar_lea.vmem %s0, 2
    %v36 = vld [vmem:[%s35] sm:$0x1]
    %37 = vrot.lane.b32.xlu0 %v36, 8
    %v38 = vpop.permute.xlu0 %37
    %vm39 = vcmask 97344
    %40 = vst.msk [vmem:[#allocation0] sm:$0x1] %vm39, %v38
    %s41 = scalar_lea.vmem %s0, 1
    %v42 = vld [vmem:[%s41] sm:$0x1]
    %43 = vrot.lane.b32.xlu0 %v42, 4
    %v44 = vpop.permute.xlu0 %43
    %vm45 = vcmask 64544
    %46 = vst.msk [vmem:[#allocation0] sm:$0x1] %vm45, %v44
    %s48 = ssub.s32 2, 1
    %v49 = vld [vmem:[#allocation0] sm:%s48]
    %s51 = ssub.s32 2, 1
    %52 = vst [vmem:[%s1] sm:%s51] %v49

// kernel: conv_transpose_bn_silu.1
$region0: #{conv_transpose_bn_silu.1}
  #allocation0 [shape = 'u32[]', space=smem, size = 0x4, offset = 0x4, fixed_abs, tag = 'smem constant byte address 0x4 - core index']
  #allocation1 [shape = 'u32[72,128]{1,0:T(1,128)}', space=vmem, size = 0x9000, scoped, tag = 'internal scratch']
  %s0 = inlined_call_operand.vmem [shape: f32[2,4,256], index: 0, kind: input, shape index: {}]
  %s1 = inlined_call_operand.vmem [shape: bf16[32,4], index: 1, kind: input, shape index: {}]
  %s2 = inlined_call_operand.vmem [shape: f32[32,1], index: 2, kind: input, shape index: {}]
  %s3 = inlined_call_operand.vmem [shape: bf16[2,32,256], index: 3, kind: output, shape index: {}]
  %s4 = sld [smem:[#allocation0]]
  $region82: #{conv_transpose_bn_silu.1} parent=0
    _
  %s6 = ssub.s32 1, %s4
  %s7 = scalar_select 0, %s6, %s4
  $region1: #{conv_transpose_bn_silu.1} parent=0
    #allocation2 [shape = 'u8[16384]{0}', space=vmem, size = 0x4000, scoped, tag = 'output window, operand 0']
    loop: start=0, step=1, limit=6
    $region2: #{conv_transpose_bn_silu.1} parent=1 // loop_pre_header
      _
    $region3: #{conv_transpose_bn_silu.1} parent=1 // loop_header
      %s9 = sphi 0, %s13
      %p10 = scmp.ge.s32.totalorder %s9, 6
      %s16 = sphi 0, %s28
      %s17 = sphi 0, %s24
      %s18 = sphi 0, %s16
      %s19 = sphi 0, %s17
      %s20 = sphi 0, %s18
      %s21 = sphi 0, %s19
      %s33 = sphi 0, %s35
      %s36 = sphi 0, %s33
      %s37 = sphi 0, %s36
      %s53 = sphi 0, %s37
      %s57 = sphi 0, %s57
      %s59 = sphi 0, %s57
      %s60 = sphi 0, %s59
      %s74 = sphi 0, %s60
      %s78 = sphi 0, %s78
      %s80 = sphi 0, %s78
      %s81 = sphi 0, %s80
      %s95 = sphi 0, %s81
      %s103 = sphi 0, %s105
      %s106 = sphi 0, %s103
      %s107 = sphi 0, %s106
      %s123 = sphi 0, %s107
    $region4: #{conv_transpose_bn_silu.1} parent=1 // loop_header_branch
      %12 = sbr.rel (%p10) target = $region8
    $region5: #{conv_transpose_bn_silu.1} parent=1 // loop_body
      %s14 = ssub.s32 %s9, 1
      %s15 = ssub.s32 %s9, 2
      %s22 = sadd.s32 1, %s17
      %p23 = scmp.ge.s32.totalorder %s22, 2
      %s24 = scalar_select %p23, 0, %s22
      %s25 = sadd.s32 1, %s16
      %s26 = scalar_select %p23, %s25, %s16
      %p27 = scmp.ge.s32.totalorder %s26, 2
      %s28 = scalar_select %p27, 0, %s26
      %s29 = ssub.s32 %s16, %s28
      %s30 = ssub.s32 %s17, %s24
      %s31 = sor.u32 %s29, %s30
      %p32 = scmp.eq.s32.totalorder %s31, 0
      %s34 = sadd.s32 %s33, 1
      %s35 = scalar_select %p32, %s33, %s34
      %p38 = pneg %p32
      %p39 = scmp.eq.s32.totalorder %s9, 3
      %p40 = por %p38, %p39
      %p41 = scmp.ne.s32.totalorder %s33, %s36
      %p42 = scmp.eq.s32.totalorder %s9, 0
      %p43 = por %p41, %p42
      %p44 = scmp.ne.s32.totalorder %s33, %s36
      %p45 = scmp.eq.s32.totalorder %s14, 3
      %p46 = por %p44, %p45
      %p47 = scmp.ne.s32.totalorder %s36, %s37
      %p48 = scmp.eq.s32.totalorder %s14, 0
      %p49 = por %p47, %p48
      %p50 = scmp.ne.s32.totalorder %s36, %s37
      %p51 = scmp.eq.s32.totalorder %s15, 3
      %p52 = por %p50, %p51
      %p54 = scmp.ne.s32.totalorder %s37, %s53
      %p55 = scmp.eq.s32.totalorder %s15, 0
      %p56 = por %p54, %p55
      %s58 = sadd.s32 %s57, 1
      %p61 = scmp.eq.s32.totalorder %s9, 3
      %p62 = scmp.ne.s32.totalorder %s57, %s59
      %p63 = scmp.eq.s32.totalorder %s9, 0
      %p64 = por %p62, %p63
      %p65 = scmp.ne.s32.totalorder %s57, %s59
      %p66 = scmp.eq.s32.totalorder %s14, 3
      %p67 = por %p65, %p66
      %p68 = scmp.ne.s32.totalorder %s59, %s60
      %p69 = scmp.eq.s32.totalorder %s14, 0
      %p70 = por %p68, %p69
      %p71 = scmp.ne.s32.totalorder %s59, %s60
      %p72 = scmp.eq.s32.totalorder %s15, 3
      %p73 = por %p71, %p72
      %p75 = scmp.ne.s32.totalorder %s60, %s74
      %p76 = scmp.eq.s32.totalorder %s15, 0
      %p77 = por %p75, %p76
      %s79 = sadd.s32 %s78, 1
      %p82 = scmp.eq.s32.totalorder %s9, 3
      %p83 = scmp.ne.s32.totalorder %s78, %s80
      %p84 = scmp.eq.s32.totalorder %s9, 0
      %p85 = por %p83, %p84
      %p86 = scmp.ne.s32.totalorder %s78, %s80
      %p87 = scmp.eq.s32.totalorder %s14, 3
      %p88 = por %p86, %p87
      %p89 = scmp.ne.s32.totalorder %s80, %s81
      %p90 = scmp.eq.s32.totalorder %s14, 0
      %p91 = por %p89, %p90
      %p92 = scmp.ne.s32.totalorder %s80, %s81
      %p93 = scmp.eq.s32.totalorder %s15, 3
      %p94 = por %p92, %p93
      %p96 = scmp.ne.s32.totalorder %s81, %s95
      %p97 = scmp.eq.s32.totalorder %s15, 0
      %p98 = por %p96, %p97
      %s99 = ssub.s32 %s16, %s28
      %s100 = ssub.s32 %s17, %s24
      %s101 = sor.u32 %s99, %s100
      %p102 = scmp.eq.s32.totalorder %s101, 0
      %s104 = sadd.s32 %s103, 1
      %s105 = scalar_select %p102, %s103, %s104
      %p108 = pneg %p102
      %p109 = scmp.eq.s32.totalorder %s9, 3
      %p110 = por %p108, %p109
      %p111 = scmp.ne.s32.totalorder %s103, %s106
      %p112 = scmp.eq.s32.totalorder %s9, 0
      %p113 = por %p111, %p112
      %p114 = scmp.ne.s32.totalorder %s103, %s106
      %p115 = scmp.eq.s32.totalorder %s14, 3
      %p116 = por %p114, %p115
      %p117 = scmp.ne.s32.totalorder %s106, %s107
      %p118 = scmp.eq.s32.totalorder %s14, 0
      %p119 = por %p117, %p118
      %p120 = scmp.ne.s32.totalorder %s106, %s107
      %p121 = scmp.eq.s32.totalorder %s15, 3
      %p122 = por %p120, %p121
      %p124 = scmp.ne.s32.totalorder %s107, %s123
      %p125 = scmp.eq.s32.totalorder %s15, 0
      %p126 = por %p124, %p125
      %p127 = scmp.le.s32.totalorder 1, %s9
      %p128 = scmp.lt.s32.totalorder %s9, 5
      %p129 = pnand %p127, %p128
      %p130 = pneg %p129
      // Predicated region
      $region9: #{conv_transpose_bn_silu.1} parent=5 // pred_check
        _
      $region10: #{conv_transpose_bn_silu.1} parent=5 // pred_check_branch
        %132 = sbr.rel (%p129) target = $region12
      $region11: #{conv_transpose_bn_silu.1} parent=5 // pred_region
        %s133 = ssub.s32 %s9, 1
        // Predicated region
        $region13: #{conv_transpose_bn_silu.1} parent=11 // pred_check
          %p134 = pneg %p70
        $region14: #{conv_transpose_bn_silu.1} parent=11 // pred_check_branch
          %136 = sbr.rel (%p134) target = $region16
        $region15: #{conv_transpose_bn_silu.1} parent=11 // pred_region
          _
        $region16: #{conv_transpose_bn_silu.1} parent=11 // pred_fallthru
          _
        // Predicated region
        $region17: #{conv_transpose_bn_silu.1} parent=11 // pred_check
          %p137 = pneg %p91
        $region18: #{conv_transpose_bn_silu.1} parent=11 // pred_check_branch
          %139 = sbr.rel (%p137) target = $region20
        $region19: #{conv_transpose_bn_silu.1} parent=11 // pred_region
          _
        $region20: #{conv_transpose_bn_silu.1} parent=11 // pred_fallthru
          _
      $region12: #{conv_transpose_bn_silu.1} parent=5 // pred_fallthru
        _
      %p140 = scmp.lt.s32.totalorder %s9, 4
      // Predicated region
      $region21: #{conv_transpose_bn_silu.1} parent=5 // pred_check
        %p141 = pneg %p140
      $region22: #{conv_transpose_bn_silu.1} parent=5 // pred_check_branch
        %143 = sbr.rel (%p141) target = $region24
      $region23: #{conv_transpose_bn_silu.1} parent=5 // pred_region
        // Predicated region
        $region25: #{conv_transpose_bn_silu.1} parent=23 // pred_check
          %p144 = pneg %p43
        $region26: #{conv_transpose_bn_silu.1} parent=23 // pred_check_branch
          %146 = sbr.rel (%p144) target = $region28
        $region27: #{conv_transpose_bn_silu.1} parent=23 // pred_region
          %p147 = scmp.lt.s32.totalorder %s16, 1
          %s148 = scalar_select %p147, %s16, 1
          %p149 = scmp.lt.s32.totalorder %s17, 1
          %s150 = scalar_select %p149, %s17, 1
          %s151 = smul.addr %s148, 2
          %s152 = sadd.s32 %s150, %s151
          %s153 = smul.addr %s152, 4
          %s154 = scalar_lea.vmem %s0, %s153
        $region28: #{conv_transpose_bn_silu.1} parent=23 // pred_fallthru
          _
      $region24: #{conv_transpose_bn_silu.1} parent=5 // pred_fallthru
        _
      %p155 = scmp.le.s32.totalorder 1, %s9
      %p156 = scmp.lt.s32.totalorder %s9, 5
      %p157 = pnand %p155, %p156
      %p158 = pneg %p157
      // Predicated region
      $region29: #{conv_transpose_bn_silu.1} parent=5 // pred_check
        _
      $region30: #{conv_transpose_bn_silu.1} parent=5 // pred_check_branch
        %160 = sbr.rel (%p157) target = $region32
      $region31: #{conv_transpose_bn_silu.1} parent=5 // pred_region
        %s161 = ssub.s32 %s9, 1
        %p162 = scmp.lt.s32.totalorder %s18, 1
        %s163 = scalar_select %p162, %s18, 1
        %p164 = scmp.lt.s32.totalorder %s19, 1
        %s165 = scalar_select %p164, %s19, 1
        %s166 = smul.addr %s163, 2
        %s167 = sadd.s32 %s165, %s166
        %s168 = smul.addr %s167, 4
        %s169 = scalar_lea.vmem %s0, %s168
        %p170 = pneg %p49
        %p171 = pneg %p46
        %p172 = pneg %p70
        %p173 = pneg %p67
        %p174 = pneg %p91
        %p175 = pneg %p88
        %p176 = pneg %p119
        %p177 = pneg %p116
        %s178 = sand.u32 %s106, 1
        %s179 = sand.u32 %s106, 1
        %s180 = smul.addr %s179, 16
        %s181 = scalar_lea.vmem [#allocation2], %s180
        %p182 = scmp.lt.s32.totalorder %s18, 1
        %s183 = scalar_select %p182, %s18, 1
        %p184 = scmp.lt.s32.totalorder %s19, 1
        %s185 = scalar_select %p184, %s19, 1
        %s186 = smul.addr %s183, 2
        %s187 = sadd.s32 %s185, %s186
        %s188 = smul.addr %s187, 4
        %s189 = scalar_lea.vmem %s0, %s188
        %v191 = vld [vmem:[%s189] sm:$0xf]
        %v192 = vpack.c.bf16 %v191, %v191
        %v193 = vld [vmem:[%s1] sm:$0xf]
        %v194 = vld [vmem:[%s1 + $0x4] sm:$0xf]
        %v195 = vld [vmem:[%s1 + $0x8] sm:$0xf]
        %v196 = vld [vmem:[%s1 + $0xc] sm:$0xf]
        %v197 = vld [vmem:[%s2] sm:$0xff]
        %v198 = vld [vmem:[%s2 + $0x8] sm:$0xff]
        %v199 = vld [vmem:[%s2 + $0x10] sm:$0xff]
        %v200 = vld [vmem:[%s2 + $0x18] sm:$0xff]
        %202 = vset.pattern.permute.xlu0 0
        %203 = vperm.xlu0 %202, %v197
        %v204 = vpop.permute.xlu0 %203
        %207 = vset.pattern.permute.xlu0 0
        %208 = vperm.xlu0 %207, %v198
        %v209 = vpop.permute.xlu0 %208
        %212 = vset.pattern.permute.xlu0 0
        %213 = vperm.xlu0 %212, %v199
        %v214 = vpop.permute.xlu0 %213
        %217 = vset.pattern.permute.xlu0 0
        %218 = vperm.xlu0 %217, %v200
        %v219 = vpop.permute.xlu0 %218
        %v225 = vunpack.c.l.b16 %v193
        %v226 = vunpack.c.l.b16 %v194
        %v227 = vunpack.c.l.b16 %v195
        %v228 = vunpack.c.l.b16 %v196
        %v229 = vpack.c.b16 %v226, %v225
        %v230 = vpack.c.b16 %v228, %v227
        %vm231 = vcmask 31744
        %v233 = vsel %vm231, %v229, 0
        %v236 = vsel %vm231, %v230, 0
        %vm238 = vcmask 1041408
        %v240 = vsel %vm238, %v192, 0
        %242 = vmatpush.bf16.msra.mxu0 0
        %243 = vmatpush.bf16.msra.mxu0 0
        %244 = vmatpush.bf16.msra.mxu0 0
        %245 = vmatpush.bf16.msra.mxu0 0
        %246 = vmatpush.bf16.msra.mxu0 0
        %247 = vmatpush.bf16.msra.mxu0 0
        %248 = vmatpush.bf16.msra.mxu0 0
        %249 = vmatpush.bf16.msra.mxu0 %v240
        %250 = vmatmul.bf16.gmra.mxu0 %v233
        %v251 = vpop.f32.mrf.mxu0
        %v252 = vadd.f32 %v204, %v251
        %v253 = vpop.f32.mrf.mxu0
        %v254 = vadd.f32 %v209, %v253
        %255 = vmatmul.bf16.gmra.mxu0 %v236
        %v256 = vpop.f32.mrf.mxu0
        %v257 = vadd.f32 %v214, %v256
        %v258 = vpop.f32.mrf.mxu0
        %v259 = vadd.f32 %v219, %v258
        %260 = vdwg.mxu0
        %v261 = vxor.u32 %v252, 2147483648
        %v262 = vxor.u32 %v254, 2147483648
        %v263 = vxor.u32 %v257, 2147483648
        %v264 = vxor.u32 %v259, 2147483648
        %v265 = vmul.f32 %v261, 1.442695
        %v266 = vpow.pop %v265
        %v267 = vmul.f32 %v262, 1.442695
        %v268 = vpow.pop %v267
        %v269 = vmul.f32 %v263, 1.442695
        %v270 = vpow.pop %v269
        %v271 = vmul.f32 %v264, 1.442695
        %v272 = vpow.pop %v271
        %v273 = vadd.f32 %v266, 1.0
        %v274 = vadd.f32 %v268, 1.0
        %v275 = vadd.f32 %v270, 1.0
        %v276 = vadd.f32 %v272, 1.0
        %v277 = vrcp.pop %v273
        %v278 = vmul.f32 %v273, %v277
        %v279 = vsub.f32 1.0, %v278
        %v280 = vmul.f32 %v277, %v279
        %v281 = vadd.f32 %v277, %v280
        %vm282 = vweird.f32 %v273
        %vm283 = vweird.f32 %v277
        %vm284 = vmor %vm282, %vm283
        %v285 = vsel %vm284, %v277, %v281
        %v286 = vand.u32 2147483647, %v273
        %vm287 = vcmp.eq.f32.partialorder %v286, 8.507059e+37
        %v288 = vand.u32 %v273, 2147483648
        %v289 = vor.u32 1.1754944e-38, %v288
        %v290 = vsel %vm287, %v289, %v285
        %v291 = vmul.f32 1.0, %v290
        %v292 = vrcp.pop %v274
        %v293 = vmul.f32 %v274, %v292
        %v294 = vsub.f32 1.0, %v293
        %v295 = vmul.f32 %v292, %v294
        %v296 = vadd.f32 %v292, %v295
        %vm297 = vweird.f32 %v274
        %vm298 = vweird.f32 %v292
        %vm299 = vmor %vm297, %vm298
        %v300 = vsel %vm299, %v292, %v296
        %v301 = vand.u32 2147483647, %v274
        %vm302 = vcmp.eq.f32.partialorder %v301, 8.507059e+37
        %v303 = vand.u32 %v274, 2147483648
        %v304 = vor.u32 1.1754944e-38, %v303
        %v305 = vsel %vm302, %v304, %v300
        %v306 = vmul.f32 1.0, %v305
        %v307 = vrcp.pop %v275
        %v308 = vmul.f32 %v275, %v307
        %v309 = vsub.f32 1.0, %v308
        %v310 = vmul.f32 %v307, %v309
        %v311 = vadd.f32 %v307, %v310
        %vm312 = vweird.f32 %v275
        %vm313 = vweird.f32 %v307
        %vm314 = vmor %vm312, %vm313
        %v315 = vsel %vm314, %v307, %v311
        %v316 = vand.u32 2147483647, %v275
        %vm317 = vcmp.eq.f32.partialorder %v316, 8.507059e+37
        %v318 = vand.u32 %v275, 2147483648
        %v319 = vor.u32 1.1754944e-38, %v318
        %v320 = vsel %vm317, %v319, %v315
        %v321 = vmul.f32 1.0, %v320
        %v322 = vrcp.pop %v276
        %v323 = vmul.f32 %v276, %v322
        %v324 = vsub.f32 1.0, %v323
        %v325 = vmul.f32 %v322, %v324
        %v326 = vadd.f32 %v322, %v325
        %vm327 = vweird.f32 %v276
        %vm328 = vweird.f32 %v322
        %vm329 = vmor %vm327, %vm328
        %v330 = vsel %vm329, %v322, %v326
        %v331 = vand.u32 2147483647, %v276
        %vm332 = vcmp.eq.f32.partialorder %v331, 8.507059e+37
        %v333 = vand.u32 %v276, 2147483648
        %v334 = vor.u32 1.1754944e-38, %v333
        %v335 = vsel %vm332, %v334, %v330
        %v336 = vmul.f32 1.0, %v335
        %v337 = vmul.f32 %v252, %v291
        %v338 = vmul.f32 %v254, %v306
        %v339 = vmul.f32 %v257, %v321
        %v340 = vmul.f32 %v259, %v336
        %v341 = vpack.c.bf16 %v337, %v337
        %v342 = vpack.c.bf16 %v338, %v338
        %v343 = vpack.c.bf16 %v339, %v339
        %v344 = vpack.c.bf16 %v340, %v340
        %345 = vst [vmem:[%s181] sm:$0xf] %v341
        %346 = vst [vmem:[%s181 + $0x4] sm:$0xf] %v342
        %347 = vst [vmem:[%s181 + $0x8] sm:$0xf] %v343
        %348 = vst [vmem:[%s181 + $0xc] sm:$0xf] %v344
        %s349 = sand.u32 %s106, 1
        %s350 = sand.u32 %s106, 1
        %s351 = smul.addr %s350, 16
        %s352 = scalar_lea.vmem [#allocation2], %s351
        // Predicated region
        $region33: #{conv_transpose_bn_silu.1} parent=31 // pred_check
          %p353 = pneg %p116
        $region34: #{conv_transpose_bn_silu.1} parent=31 // pred_check_branch
          %355 = sbr.rel (%p353) target = $region36
        $region35: #{conv_transpose_bn_silu.1} parent=31 // pred_region
          %s356 = smul.addr %s18, 8
          %s357 = sadd.s32 %s19, %s356
          %s358 = smul.addr %s357, 4
          %s359 = scalar_lea.vmem %s3, %s358
          // Predicated region
          $region37: #{conv_transpose_bn_silu.1} parent=35 // pred_check
            _
          $region38: #{conv_transpose_bn_silu.1} parent=35 // pred_check_branch
            %361 = sbr.rel (0) target = $region40
          $region39: #{conv_transpose_bn_silu.1} parent=35 // pred_region
            // Predicated region
            $region41: #{conv_transpose_bn_silu.1} parent=39 // pred_check
              _
            $region42: #{conv_transpose_bn_silu.1} parent=39 // pred_check_branch
              %363 = sbr.rel target = $region44
            $region43: #{conv_transpose_bn_silu.1} parent=39 // pred_region
              // Predicated region
              $region56: #{conv_transpose_bn_silu.1} parent=43 // pred_check
                _
              $region57: #{conv_transpose_bn_silu.1} parent=43 // pred_check_branch
                %385 = sbr.rel (0) target = $region59
              $region58: #{conv_transpose_bn_silu.1} parent=43 // pred_region
                loop: start=0, step=1, limit=1
                $region60: #{conv_transpose_bn_silu.1} parent=58 // loop_pre_header
                  _
                $region61: #{conv_transpose_bn_silu.1} parent=58 // loop_header
                  %s387 = sphi 0, %s391
                  %p388 = scmp.ge.s32.totalorder %s387, 1
                  %s392 = sphi %s352, %s352
                  %s393 = sphi %s359, %s359
                $region62: #{conv_transpose_bn_silu.1} parent=58 // loop_header_branch
                  %390 = sbr.rel (%p388) target = $region66
                $region63: #{conv_transpose_bn_silu.1} parent=58 // loop_body
                  _
                $region64: #{conv_transpose_bn_silu.1} parent=58 // loop_footer
                  %s391 = sadd.s32 1, %s387
                $region65: #{conv_transpose_bn_silu.1} parent=58 // loop_footer_branch
                  %386 = sbr.rel target = $region61
                $region66: #{conv_transpose_bn_silu.1} parent=58 // loop_exit
                  _
                %s395 = ssub.s32 16, 1
                loop: start=0, step=1, limit=1
                $region67: #{conv_transpose_bn_silu.1} parent=58 // loop_pre_header
                  _
                $region68: #{conv_transpose_bn_silu.1} parent=58 // loop_header
                  %s397 = sphi 0, %s401
                  %p398 = scmp.ge.s32.totalorder %s397, 1
                  %s402 = sphi %s352, %s352
                  %s403 = sphi %s359, %s359
                $region69: #{conv_transpose_bn_silu.1} parent=58 // loop_header_branch
                  %400 = sbr.rel (%p398) target = $region73
                $region70: #{conv_transpose_bn_silu.1} parent=58 // loop_body
                  %v404 = vld [vmem:[%s402] sm:%s395]
                  %405 = vst [vmem:[%s403] sm:%s395] %v404
                  %v406 = vld [vmem:[%s402 + $0x4] sm:%s395]
                  %407 = vst [vmem:[%s403 + $0x8] sm:%s395] %v406
                  %v408 = vld [vmem:[%s402 + $0x8] sm:%s395]
                  %409 = vst [vmem:[%s403 + $0x10] sm:%s395] %v408
                  %v410 = vld [vmem:[%s402 + $0xc] sm:%s395]
                  %411 = vst [vmem:[%s403 + $0x18] sm:%s395] %v410
                $region71: #{conv_transpose_bn_silu.1} parent=58 // loop_footer
                  %s401 = sadd.s32 1, %s397
                $region72: #{conv_transpose_bn_silu.1} parent=58 // loop_footer_branch
                  %396 = sbr.rel target = $region68
                $region73: #{conv_transpose_bn_silu.1} parent=58 // loop_exit
                  _
              $region59: #{conv_transpose_bn_silu.1} parent=43 // pred_fallthru
                _
            $region44: #{conv_transpose_bn_silu.1} parent=39 // pred_fallthru
              _
            // Predicated region
            $region45: #{conv_transpose_bn_silu.1} parent=39 // pred_check
              _
            $region46: #{conv_transpose_bn_silu.1} parent=39 // pred_check_branch
              %365 = sbr.rel (0) target = $region48
            $region47: #{conv_transpose_bn_silu.1} parent=39 // pred_region
              %s367 = ssub.s32 16, 1
              loop: start=0, step=1, limit=1
              $region49: #{conv_transpose_bn_silu.1} parent=47 // loop_pre_header
                _
              $region50: #{conv_transpose_bn_silu.1} parent=47 // loop_header
                %s369 = sphi 0, %s373
                %p370 = scmp.ge.s32.totalorder %s369, 1
                %s374 = sphi %s352, %s352
                %s375 = sphi %s359, %s359
              $region51: #{conv_transpose_bn_silu.1} parent=47 // loop_header_branch
                %372 = sbr.rel (%p370) target = $region55
              $region52: #{conv_transpose_bn_silu.1} parent=47 // loop_body
                %v376 = vld [vmem:[%s374] sm:%s367]
                %377 = vst [vmem:[%s375] sm:%s367] %v376
                %v378 = vld [vmem:[%s374 + $0x4] sm:%s367]
                %379 = vst [vmem:[%s375 + $0x8] sm:%s367] %v378
                %v380 = vld [vmem:[%s374 + $0x8] sm:%s367]
                %381 = vst [vmem:[%s375 + $0x10] sm:%s367] %v380
                %v382 = vld [vmem:[%s374 + $0xc] sm:%s367]
                %383 = vst [vmem:[%s375 + $0x18] sm:%s367] %v382
              $region53: #{conv_transpose_bn_silu.1} parent=47 // loop_footer
                %s373 = sadd.s32 1, %s369
              $region54: #{conv_transpose_bn_silu.1} parent=47 // loop_footer_branch
                %368 = sbr.rel target = $region50
              $region55: #{conv_transpose_bn_silu.1} parent=47 // loop_exit
                _
            $region48: #{conv_transpose_bn_silu.1} parent=39 // pred_fallthru
              _
          $region40: #{conv_transpose_bn_silu.1} parent=35 // pred_fallthru
            _
          %412 = vnop
        $region36: #{conv_transpose_bn_silu.1} parent=31 // pred_fallthru
          _
      $region32: #{conv_transpose_bn_silu.1} parent=5 // pred_fallthru
        _
      %p413 = scmp.le.s32.totalorder 2, %s9
      // Predicated region
      $region74: #{conv_transpose_bn_silu.1} parent=5 // pred_check
        %p414 = pneg %p413
      $region75: #{conv_transpose_bn_silu.1} parent=5 // pred_check_branch
        %416 = sbr.rel (%p414) target = $region77
      $region76: #{conv_transpose_bn_silu.1} parent=5 // pred_region
        %s417 = ssub.s32 %s9, 2
        // Predicated region
        $region78: #{conv_transpose_bn_silu.1} parent=76 // pred_check
          %p418 = pneg %p122
        $region79: #{conv_transpose_bn_silu.1} parent=76 // pred_check_branch
          %420 = sbr.rel (%p418) target = $region81
        $region80: #{conv_transpose_bn_silu.1} parent=76 // pred_region
          %s421 = sand.u32 %s107, 1
          %s422 = sand.u32 %s107, 1
          %s423 = smul.addr %s422, 16
          %s424 = scalar_lea.vmem [#allocation2], %s423
        $region81: #{conv_transpose_bn_silu.1} parent=76 // pred_fallthru
          _
      $region77: #{conv_transpose_bn_silu.1} parent=5 // pred_fallthru
        _
    $region6: #{conv_transpose_bn_silu.1} parent=1 // loop_footer
      %s13 = sadd.s32 1, %s9
    $region7: #{conv_transpose_bn_silu.1} parent=1 // loop_footer_branch
      %8 = sbr.rel target = $region3
    $region8: #{conv_transpose_bn_silu.1} parent=1 // loop_exit
      _

</llo_original>
